<compile_context>
chip_gen: v7x
topology: tpu7x:2x2x1
jax: 0.10.0
libtpu: 0.0.40
codegen_flags: <defaults>
</compile_context>

<pallas_src>
import math

import jax
import jax.numpy as jnp
from jax import lax
from jax.experimental import pallas as pl
from jax.experimental.pallas import tpu as pltpu

_INV_SQRT2 = 1.0 / math.sqrt(2.0)


def _mlp_kernel(x_ref, w1_ref, b1_ref, w2_ref, b2_ref, o_ref):
    # fc1: (tm, C) @ (C, H), bf16 operands, f32 accumulation on the MXU.
    h = jnp.dot(x_ref[...], w1_ref[...], preferred_element_type=jnp.float32)
    h = h + b1_ref[...]                      # bias kept in f32
    # Exact GELU (matches torch.nn.GELU default): 0.5*x*(1+erf(x/sqrt(2)))
    h = 0.5 * h * (1.0 + lax.erf(h * _INV_SQRT2))
    # dropout(p=0.0) is the identity -> nothing to do
    # fc2: (tm, H) @ (H, O); cast activations back to the weight dtype (bf16)
    out = jnp.dot(h.astype(w2_ref.dtype), w2_ref[...],
                  preferred_element_type=jnp.float32)
    out = out + b2_ref[...]
    o_ref[...] = out.astype(o_ref.dtype)


def _round_up(a, b):
    return (a + b - 1) // b * b


def mlp_pallas(x, w1, b1, w2, b2, *, tile_m=256, compute_dtype=jnp.bfloat16):
    """x: (B, N, C). Returns (B, N, out_features) in x.dtype."""
    B, N, C = x.shape
    H = w1.shape[1]
    O = w2.shape[1]
    M = B * N

    # Sublane granularity: bf16 packs 16 rows per vreg, f32 packs 8.
    row_align = 16 if compute_dtype == jnp.bfloat16 else 8
    # Effective token tile: large (MXU-friendly) but never bigger than padded M.
    tm = max(row_align, min(int(tile_m), _round_up(M, row_align)))
    tm = _round_up(tm, row_align)
    M_pad = _round_up(M, tm)

    x2d = x.reshape(M, C).astype(compute_dtype)
    if M_pad != M:
        x2d = jnp.pad(x2d, ((0, M_pad - M), (0, 0)))
    w1c = w1.astype(compute_dtype)
    w2c = w2.astype(compute_dtype)
    b1_2d = b1.reshape(1, H).astype(jnp.float32)
    b2_2d = b2.reshape(1, O).astype(jnp.float32)

    grid = (M_pad // tm,)

    out_itemsize = jnp.dtype(x.dtype).itemsize
    cost = pl.CostEstimate(
        flops=2 * M_pad * (C * H + H * O),
        transcendentals=M_pad * H,                       # erf on the fc1 output
        bytes_accessed=(x2d.size * x2d.dtype.itemsize
                        + w1c.size * w1c.dtype.itemsize
                        + w2c.size * w2c.dtype.itemsize
                        + (b1_2d.size + b2_2d.size) * 4
                        + M_pad * O * out_itemsize),
    )

    def build(single_buffer_consts):
        const_kw = {"pipeline_mode": pl.Buffered(1)} if single_buffer_consts else {}
        return pl.pallas_call(
            _mlp_kernel,
            out_shape=jax.ShapeDtypeStruct((M_pad, O), x.dtype),
            grid_spec=pltpu.PrefetchScalarGridSpec(
                num_scalar_prefetch=0,
                grid=grid,
                in_specs=[
                    pl.BlockSpec((tm, C), lambda i: (i, 0)),             # x tile
                    pl.BlockSpec((C, H), lambda i: (0, 0), **const_kw),  # w1 resident
                    pl.BlockSpec((1, H), lambda i: (0, 0), **const_kw),  # b1
                    pl.BlockSpec((H, O), lambda i: (0, 0), **const_kw),  # w2 resident
                    pl.BlockSpec((1, O), lambda i: (0, 0), **const_kw),  # b2
                ],
                out_specs=pl.BlockSpec((tm, O), lambda i: (i, 0)),
            ),
            compiler_params=pltpu.CompilerParams(
                dimension_semantics=("parallel",),        # shards M tiles across TCs
                vmem_limit_bytes=48 * 1024 * 1024,        # safe on v5e/v6e/v7x
            ),
            cost_estimate=cost,
        )

    try:
        out2d = build(True)(x2d, w1c, b1_2d, w2c, b2_2d)
    except Exception:
        # Fallback: default double-buffering if this JAX build rejects Buffered(1).
        out2d = build(False)(x2d, w1c, b1_2d, w2c, b2_2d)

    if M_pad != M:
        out2d = out2d[:M]
    return out2d.reshape(B, N, O)


def mlp_reference(x, w1, b1, w2, b2):
    h = jnp.einsum("bnc,ch->bnh", x, w1) + b1
    h = 0.5 * h * (1.0 + lax.erf(h * _INV_SQRT2))
    return jnp.einsum("bnh,ho->bno", h, w2) + b2


if __name__ == "__main__":
    # Small shapes consistent with the module's forward: tokens (B, N, C).
    # H and O are multiples of 128 so the kernel's intermediate/output slabs are
    # lane-dense (unmasked stores).
    B, N = 2, 8
    in_features = 128
    hidden_features = 256
    out_features = 128

    key = jax.random.PRNGKey(0)
    kx, kw1, kb1, kw2, kb2 = jax.random.split(key, 5)

    x = jax.random.normal(kx, (B, N, in_features), dtype=jnp.float32)
    # Deterministic synthetic parameters (nn.Linear weights stored transposed).
    w1 = jax.random.normal(kw1, (in_features, hidden_features), dtype=jnp.float32) * 0.05
    b1 = jax.random.normal(kb1, (hidden_features,), dtype=jnp.float32) * 0.05
    w2 = jax.random.normal(kw2, (hidden_features, out_features), dtype=jnp.float32) * 0.05
    b2 = jax.random.normal(kb2, (out_features,), dtype=jnp.float32) * 0.05

    out = mlp_pallas(x, w1, b1, w2, b2)
    jax.block_until_ready(out)

    ref = mlp_reference(x, w1, b1, w2, b2)
    assert out.shape == (B, N, out_features)
    # bf16 operands with f32 accumulation -> loosened tolerance vs f32 reference.
    assert jnp.allclose(out, ref, atol=3e-2, rtol=3e-2), "mismatch vs reference"

    print("KERNEL_OK")
</pallas_src>

<mosaic_0001>
module attributes {stable_mosaic.version = 11 : i64} {
  func.func @_mlp_kernel(%arg0: i32, %arg1: memref<16x128xbf16, #tpu.memory_space<vmem>>, %arg2: memref<128x256xbf16, #tpu.memory_space<vmem>>, %arg3: memref<1x256xf32, #tpu.memory_space<vmem>>, %arg4: memref<256x128xbf16, #tpu.memory_space<vmem>>, %arg5: memref<1x128xf32, #tpu.memory_space<vmem>>, %arg6: memref<16x128xf32, #tpu.memory_space<vmem>>) attributes {dimension_semantics = [#tpu.dimension_semantics<parallel>], iteration_bounds = array<i64: 1>, scalar_prefetch = 0 : i64, scratch_operands = 0 : i64, tpu.core_type = #tpu.core_type<tc>, window_params = [{transform_indices = @transform_0, window_bounds = array<i64: 16, 128>}, {pipeline_mode = #tpu.pipeline_mode<synchronous>, transform_indices = @transform_1, window_bounds = array<i64: 128, 256>}, {pipeline_mode = #tpu.pipeline_mode<synchronous>, transform_indices = @transform_2, window_bounds = array<i64: 1, 256>}, {pipeline_mode = #tpu.pipeline_mode<synchronous>, transform_indices = @transform_3, window_bounds = array<i64: 256, 128>}, {pipeline_mode = #tpu.pipeline_mode<synchronous>, transform_indices = @transform_4, window_bounds = array<i64: 1, 128>}, {transform_indices = @transform_5, window_bounds = array<i64: 16, 128>}]} {
    %c0 = arith.constant 0 : index
    %c0_0 = arith.constant 0 : index
    %0 = vector.load %arg1[%c0, %c0_0] : memref<16x128xbf16, #tpu.memory_space<vmem>>, vector<16x128xbf16>
    %c0_1 = arith.constant 0 : index
    %c0_2 = arith.constant 0 : index
    %1 = vector.load %arg2[%c0_1, %c0_2] : memref<128x256xbf16, #tpu.memory_space<vmem>>, vector<128x256xbf16>
    %cst = arith.constant dense<0.000000e+00> : vector<16x256xf32>
    %2 = tpu.matmul %0, %1, %cst {dimension_numbers = #tpu.dot_dimension_numbers<[1], [0], [0], [1], [0, 0, 1, 1], [], []>} : vector<16x128xbf16>, vector<128x256xbf16>, vector<16x256xf32> -> vector<16x256xf32>
    %c0_3 = arith.constant 0 : index
    %c0_4 = arith.constant 0 : index
    %3 = vector.load %arg3[%c0_3, %c0_4] : memref<1x256xf32, #tpu.memory_space<vmem>>, vector<1x256xf32>
    %4 = vector.broadcast %3 : vector<1x256xf32> to vector<16x256xf32>
    %5 = arith.addf %2, %4 : vector<16x256xf32>
    %cst_5 = arith.constant 5.000000e-01 : f32
    %6 = vector.broadcast %cst_5 : f32 to vector<16x256xf32>
    %7 = arith.mulf %6, %5 : vector<16x256xf32>
    %cst_6 = arith.constant 0.707106769 : f32
    %8 = vector.broadcast %cst_6 : f32 to vector<16x256xf32>
    %9 = arith.mulf %5, %8 : vector<16x256xf32>
    %10 = math.erf %9 : vector<16x256xf32>
    %cst_7 = arith.constant 1.000000e+00 : f32
    %11 = vector.broadcast %cst_7 : f32 to vector<16x256xf32>
    %12 = arith.addf %11, %10 : vector<16x256xf32>
    %13 = arith.mulf %7, %12 : vector<16x256xf32>
    %14 = arith.truncf %13 : vector<16x256xf32> to vector<16x256xbf16>
    %c0_8 = arith.constant 0 : index
    %c0_9 = arith.constant 0 : index
    %15 = vector.load %arg4[%c0_8, %c0_9] : memref<256x128xbf16, #tpu.memory_space<vmem>>, vector<256x128xbf16>
    %cst_10 = arith.constant dense<0.000000e+00> : vector<16x128xf32>
    %16 = tpu.matmul %14, %15, %cst_10 {dimension_numbers = #tpu.dot_dimension_numbers<[1], [0], [0], [1], [0, 0, 1, 1], [], []>} : vector<16x256xbf16>, vector<256x128xbf16>, vector<16x128xf32> -> vector<16x128xf32>
    %c0_11 = arith.constant 0 : index
    %c0_12 = arith.constant 0 : index
    %17 = vector.load %arg5[%c0_11, %c0_12] : memref<1x128xf32, #tpu.memory_space<vmem>>, vector<1x128xf32>
    %18 = vector.broadcast %17 : vector<1x128xf32> to vector<16x128xf32>
    %19 = arith.addf %16, %18 : vector<16x128xf32>
    %c0_13 = arith.constant 0 : index
    %c0_14 = arith.constant 0 : index
    %20 = vector.load %arg6[%c0_13, %c0_14] : memref<16x128xf32, #tpu.memory_space<vmem>>, vector<16x128xf32>
    tpu.vector_store %arg6[%c0_13, %c0_14], %19 {strides = array<i32>} : memref<16x128xf32, #tpu.memory_space<vmem>>, vector<16x128xf32>,
    return
  }
  func.func @transform_0(%arg0: i32) -> (i32, i32) {
    %c0_i32 = arith.constant 0 : i32
    %c0_i32_0 = arith.constant 0 : i32
    return %arg0, %c0_i32 : i32, i32
  }
  func.func @transform_1(%arg0: i32) -> (i32, i32) {
    %c0_i32 = arith.constant 0 : i32
    %c0_i32_0 = arith.constant 0 : i32
    %c0_i32_1 = arith.constant 0 : i32
    return %c0_i32, %c0_i32_0 : i32, i32
  }
  func.func @transform_2(%arg0: i32) -> (i32, i32) {
    %c0_i32 = arith.constant 0 : i32
    %c0_i32_0 = arith.constant 0 : i32
    %c0_i32_1 = arith.constant 0 : i32
    return %c0_i32, %c0_i32_0 : i32, i32
  }
  func.func @transform_3(%arg0: i32) -> (i32, i32) {
    %c0_i32 = arith.constant 0 : i32
    %c0_i32_0 = arith.constant 0 : i32
    %c0_i32_1 = arith.constant 0 : i32
    return %c0_i32, %c0_i32_0 : i32, i32
  }
  func.func @transform_4(%arg0: i32) -> (i32, i32) {
    %c0_i32 = arith.constant 0 : i32
    %c0_i32_0 = arith.constant 0 : i32
    %c0_i32_1 = arith.constant 0 : i32
    return %c0_i32, %c0_i32_0 : i32, i32
  }
  func.func @transform_5(%arg0: i32) -> (i32, i32) {
    %c0_i32 = arith.constant 0 : i32
    %c0_i32_0 = arith.constant 0 : i32
    return %arg0, %c0_i32 : i32, i32
  }
}

module attributes {stable_mosaic.version = 11 : i64} {
  func.func @_mlp_kernel(%arg0: i32, %arg1: memref<16x128xbf16, #tpu.memory_space<vmem>>, %arg2: memref<128x256xbf16, #tpu.memory_space<vmem>>, %arg3: memref<1x256xf32, #tpu.memory_space<vmem>>, %arg4: memref<256x128xbf16, #tpu.memory_space<vmem>>, %arg5: memref<1x128xf32, #tpu.memory_space<vmem>>, %arg6: memref<16x128xf32, #tpu.memory_space<vmem>>) attributes {dimension_semantics = [#tpu.dimension_semantics<parallel>], iteration_bounds = array<i64: 1>, scalar_prefetch = 0 : i64, scratch_operands = 0 : i64, tpu.core_type = #tpu.core_type<tc>, window_params = [{transform_indices = @transform_0, window_bounds = array<i64: 16, 128>}, {pipeline_mode = #tpu.pipeline_mode<synchronous>, transform_indices = @transform_1, window_bounds = array<i64: 128, 256>}, {pipeline_mode = #tpu.pipeline_mode<synchronous>, transform_indices = @transform_2, window_bounds = array<i64: 1, 256>}, {pipeline_mode = #tpu.pipeline_mode<synchronous>, transform_indices = @transform_3, window_bounds = array<i64: 256, 128>}, {pipeline_mode = #tpu.pipeline_mode<synchronous>, transform_indices = @transform_4, window_bounds = array<i64: 1, 128>}, {transform_indices = @transform_5, window_bounds = array<i64: 16, 128>}]} {
    %c0 = arith.constant 0 : index
    %c0_0 = arith.constant 0 : index
    %0 = vector.load %arg1[%c0, %c0_0] : memref<16x128xbf16, #tpu.memory_space<vmem>>, vector<16x128xbf16>
    %c0_1 = arith.constant 0 : index
    %c0_2 = arith.constant 0 : index
    %1 = vector.load %arg2[%c0_1, %c0_2] : memref<128x256xbf16, #tpu.memory_space<vmem>>, vector<128x256xbf16>
    %cst = arith.constant dense<0.000000e+00> : vector<16x256xf32>
    %2 = tpu.matmul %0, %1, %cst {dimension_numbers = #tpu.dot_dimension_numbers<[1], [0], [0], [1], [0, 0, 1, 1], [], []>} : vector<16x128xbf16>, vector<128x256xbf16>, vector<16x256xf32> -> vector<16x256xf32>
    %c0_3 = arith.constant 0 : index
    %c0_4 = arith.constant 0 : index
    %3 = vector.load %arg3[%c0_3, %c0_4] : memref<1x256xf32, #tpu.memory_space<vmem>>, vector<1x256xf32>
    %4 = vector.broadcast %3 : vector<1x256xf32> to vector<16x256xf32>
    %5 = arith.addf %2, %4 : vector<16x256xf32>
    %cst_5 = arith.constant 5.000000e-01 : f32
    %6 = vector.broadcast %cst_5 : f32 to vector<16x256xf32>
    %7 = arith.mulf %6, %5 : vector<16x256xf32>
    %cst_6 = arith.constant 0.707106769 : f32
    %8 = vector.broadcast %cst_6 : f32 to vector<16x256xf32>
    %9 = arith.mulf %5, %8 : vector<16x256xf32>
    %10 = math.erf %9 : vector<16x256xf32>
    %cst_7 = arith.constant 1.000000e+00 : f32
    %11 = vector.broadcast %cst_7 : f32 to vector<16x256xf32>
    %12 = arith.addf %11, %10 : vector<16x256xf32>
    %13 = arith.mulf %7, %12 : vector<16x256xf32>
    %14 = arith.truncf %13 : vector<16x256xf32> to vector<16x256xbf16>
    %c0_8 = arith.constant 0 : index
    %c0_9 = arith.constant 0 : index
    %15 = vector.load %arg4[%c0_8, %c0_9] : memref<256x128xbf16, #tpu.memory_space<vmem>>, vector<256x128xbf16>
    %cst_10 = arith.constant dense<0.000000e+00> : vector<16x128xf32>
    %16 = tpu.matmul %14, %15, %cst_10 {dimension_numbers = #tpu.dot_dimension_numbers<[1], [0], [0], [1], [0, 0, 1, 1], [], []>} : vector<16x256xbf16>, vector<256x128xbf16>, vector<16x128xf32> -> vector<16x128xf32>
    %c0_11 = arith.constant 0 : index
    %c0_12 = arith.constant 0 : index
    %17 = vector.load %arg5[%c0_11, %c0_12] : memref<1x128xf32, #tpu.memory_space<vmem>>, vector<1x128xf32>
    %18 = vector.broadcast %17 : vector<1x128xf32> to vector<16x128xf32>
    %19 = arith.addf %16, %18 : vector<16x128xf32>
    %c0_13 = arith.constant 0 : index
    %c0_14 = arith.constant 0 : index
    %20 = vector.load %arg6[%c0_13, %c0_14] : memref<16x128xf32, #tpu.memory_space<vmem>>, vector<16x128xf32>
    tpu.vector_store %arg6[%c0_13, %c0_14], %19 {strides = array<i32>} : memref<16x128xf32, #tpu.memory_space<vmem>>, vector<16x128xf32>,
    return
  }
  func.func @transform_0(%arg0: i32) -> (i32, i32) {
    %c0_i32 = arith.constant 0 : i32
    %c0_i32_0 = arith.constant 0 : i32
    return %arg0, %c0_i32 : i32, i32
  }
  func.func @transform_1(%arg0: i32) -> (i32, i32) {
    %c0_i32 = arith.constant 0 : i32
    %c0_i32_0 = arith.constant 0 : i32
    %c0_i32_1 = arith.constant 0 : i32
    return %c0_i32, %c0_i32_0 : i32, i32
  }
  func.func @transform_2(%arg0: i32) -> (i32, i32) {
    %c0_i32 = arith.constant 0 : i32
    %c0_i32_0 = arith.constant 0 : i32
    %c0_i32_1 = arith.constant 0 : i32
    return %c0_i32, %c0_i32_0 : i32, i32
  }
  func.func @transform_3(%arg0: i32) -> (i32, i32) {
    %c0_i32 = arith.constant 0 : i32
    %c0_i32_0 = arith.constant 0 : i32
    %c0_i32_1 = arith.constant 0 : i32
    return %c0_i32, %c0_i32_0 : i32, i32
  }
  func.func @transform_4(%arg0: i32) -> (i32, i32) {
    %c0_i32 = arith.constant 0 : i32
    %c0_i32_0 = arith.constant 0 : i32
    %c0_i32_1 = arith.constant 0 : i32
    return %c0_i32, %c0_i32_0 : i32, i32
  }
  func.func @transform_5(%arg0: i32) -> (i32, i32) {
    %c0_i32 = arith.constant 0 : i32
    %c0_i32_0 = arith.constant 0 : i32
    return %arg0, %c0_i32 : i32, i32
  }
}

</mosaic_0001>

<llo_original>
// kernel: tpu_custom_call.1
$region0: #{tpu_custom_call.1}
  #allocation0 [shape = 'u32[]', space=smem, size = 0x4, offset = 0x4, fixed_abs, tag = 'smem constant byte address 0x4 - core index']
  #allocation1 [shape = 'u32[144,128]{1,0:T(1,128)}', space=vmem, size = 0x12000, scoped, tag = 'internal scratch']
  %s0 = inlined_call_operand.hbm [shape: bf16[16,128], index: 0, kind: input, shape index: {}]
  %s1 = inlined_call_operand.hbm [shape: bf16[128,256], index: 1, kind: input, shape index: {}]
  %s2 = inlined_call_operand.vmem [shape: f32[1,256], index: 2, kind: input, shape index: {}]
  %s3 = inlined_call_operand.hbm [shape: bf16[256,128], index: 3, kind: input, shape index: {}]
  %s4 = inlined_call_operand.vmem [shape: f32[1,128], index: 4, kind: input, shape index: {}]
  %s5 = inlined_call_operand.hbm [shape: f32[16,128], index: 5, kind: output, shape index: {}]
  %s6 = sld [smem:[#allocation0]]
  $region42: #{tpu_custom_call.1} parent=0
    _
  %s8 = ssub.s32 1, %s6
  %s9 = scalar_select 0, %s8, %s6
  $region1: #{tpu_custom_call.1} parent=0
    #allocation2 [shape = 'u8[4096]{0}', space=vmem, size = 0x1000, scoped, tag = 'input window, operand 0, single buffered']
    #allocation3 [shape = 's32[1]{0}', space=sflag, size = 0x4, scoped, tag = 'scoped memory for tpu_custom_call.1']
    #allocation4 [shape = 's32[1]{0}', space=sflag, size = 0x4, scoped, tag = 'scoped memory for tpu_custom_call.1']
    #allocation5 [shape = 'u8[65536]{0}', space=vmem, size = 0x10000, scoped, tag = 'input window, operand 1, single buffered']
    #allocation6 [shape = 's32[1]{0}', space=sflag, size = 0x4, scoped, tag = 'scoped memory for tpu_custom_call.1']
    #allocation7 [shape = 'u8[65536]{0}', space=vmem, size = 0x10000, scoped, tag = 'input window, operand 3, single buffered']
    #allocation8 [shape = 'u8[8192]{0}', space=vmem, size = 0x2000, scoped, tag = 'output window, operand 0, single buffered']
    %10 = vsyncpa [#allocation3], 0
    %11 = vsyncpa [#allocation6], 0
    %12 = vsyncpa [#allocation4], 0
    // Predicated region
    $region2: #{tpu_custom_call.1} parent=1 // pred_check
      _
    $region3: #{tpu_custom_call.1} parent=1 // pred_check_branch
      %14 = sbr.rel (0) target = $region5
    $region4: #{tpu_custom_call.1} parent=1 // pred_region
      %s16 = ssub.s32 128, 128
      %17 = vsyncadd [#allocation3], %s16
      %s18 = sshll.u32 [#allocation2], 4
      %s19 = int_to_ptr.vmem [resolvable:$true] %s18
      %24 = dma.hbm_to_vmem [thread:$0]  %s0, 128, %s19, [#allocation3], 64, 64, 4
    $region5: #{tpu_custom_call.1} parent=1 // pred_fallthru
      _
    // Predicated region
    $region6: #{tpu_custom_call.1} parent=1 // pred_check
      _
    $region7: #{tpu_custom_call.1} parent=1 // pred_check_branch
      %26 = sbr.rel (0) target = $region9
    $region8: #{tpu_custom_call.1} parent=1 // pred_region
      %s28 = ssub.s32 2048, 2048
      %29 = vsyncadd [#allocation6], %s28
      %s30 = sshll.u32 [#allocation5], 4
      %s31 = int_to_ptr.vmem [resolvable:$true] %s30
      %36 = dma.hbm_to_vmem [thread:$0]  %s1, 2048, %s31, [#allocation6], 128, 128, 8
    $region9: #{tpu_custom_call.1} parent=1 // pred_fallthru
      _
    // Predicated region
    $region10: #{tpu_custom_call.1} parent=1 // pred_check
      _
    $region11: #{tpu_custom_call.1} parent=1 // pred_check_branch
      %38 = sbr.rel (0) target = $region13
    $region12: #{tpu_custom_call.1} parent=1 // pred_region
      _
    $region13: #{tpu_custom_call.1} parent=1 // pred_fallthru
      _
    // Predicated region
    $region14: #{tpu_custom_call.1} parent=1 // pred_check
      _
    $region15: #{tpu_custom_call.1} parent=1 // pred_check_branch
      %40 = sbr.rel (0) target = $region17
    $region16: #{tpu_custom_call.1} parent=1 // pred_region
      %s42 = ssub.s32 2048, 2048
      %43 = vsyncadd [#allocation6], %s42
      %s44 = sshll.u32 [#allocation7], 4
      %s45 = int_to_ptr.vmem [resolvable:$true] %s44
      %50 = dma.hbm_to_vmem [thread:$0]  %s3, 2048, %s45, [#allocation6], 64, 64, 4
    $region17: #{tpu_custom_call.1} parent=1 // pred_fallthru
      _
    // Predicated region
    $region18: #{tpu_custom_call.1} parent=1 // pred_check
      _
    $region19: #{tpu_custom_call.1} parent=1 // pred_check_branch
      %52 = sbr.rel (0) target = $region21
    $region20: #{tpu_custom_call.1} parent=1 // pred_region
      _
    $region21: #{tpu_custom_call.1} parent=1 // pred_fallthru
      _
    // Predicated region
    $region22: #{tpu_custom_call.1} parent=1 // pred_check
      _
    $region23: #{tpu_custom_call.1} parent=1 // pred_check_branch
      %54 = sbr.rel (0) target = $region25
    $region24: #{tpu_custom_call.1} parent=1 // pred_region
      %55 = dma.done [#allocation3], 128
    $region25: #{tpu_custom_call.1} parent=1 // pred_fallthru
      _
    // Predicated region
    $region26: #{tpu_custom_call.1} parent=1 // pred_check
      _
    $region27: #{tpu_custom_call.1} parent=1 // pred_check_branch
      %57 = sbr.rel (0) target = $region29
    $region28: #{tpu_custom_call.1} parent=1 // pred_region
      %58 = dma.done [#allocation6], 2048
    $region29: #{tpu_custom_call.1} parent=1 // pred_fallthru
      _
    // Predicated region
    $region30: #{tpu_custom_call.1} parent=1 // pred_check
      _
    $region31: #{tpu_custom_call.1} parent=1 // pred_check_branch
      %60 = sbr.rel (0) target = $region33
    $region32: #{tpu_custom_call.1} parent=1 // pred_region
      %61 = dma.done [#allocation6], 2048
    $region33: #{tpu_custom_call.1} parent=1 // pred_fallthru
      _
    %v63 = vld [vmem:[#allocation2] sm:$0xf]
    %v64 = vld [vmem:[#allocation2 + $0x4] sm:$0xf]
    %v65 = vld [vmem:[#allocation5] sm:$0xff]
    %v66 = vld [vmem:[#allocation5 + $0x8] sm:$0xff]
    %v67 = vld [vmem:[#allocation5 + $0x10] sm:$0xff]
    %v68 = vld [vmem:[#allocation5 + $0x18] sm:$0xff]
    %v69 = vld [vmem:[#allocation5 + $0x20] sm:$0xff]
    %v70 = vld [vmem:[#allocation5 + $0x28] sm:$0xff]
    %v71 = vld [vmem:[#allocation5 + $0x30] sm:$0xff]
    %v72 = vld [vmem:[#allocation5 + $0x38] sm:$0xff]
    %v73 = vld [vmem:[#allocation5 + $0x40] sm:$0xff]
    %v74 = vld [vmem:[#allocation5 + $0x48] sm:$0xff]
    %v75 = vld [vmem:[#allocation5 + $0x50] sm:$0xff]
    %v76 = vld [vmem:[#allocation5 + $0x58] sm:$0xff]
    %v77 = vld [vmem:[#allocation5 + $0x60] sm:$0xff]
    %v78 = vld [vmem:[#allocation5 + $0x68] sm:$0xff]
    %v79 = vld [vmem:[#allocation5 + $0x70] sm:$0xff]
    %v80 = vld [vmem:[#allocation5 + $0x78] sm:$0xff]
    %v81 = vld [vmem:[%s2] sm:$0x3]
    %v83 = vlaneseq
    %v84 = vshrl.u32 %v83, 7
    %v85 = vsub.s32 0, %v84
    %v86 = vrot.slane %v81, %v85
    %v87 = vlaneseq
    %v88 = vshrl.u32 %v87, 7
    %v89 = vsub.s32 1, %v88
    %v90 = vrot.slane %v81, %v89
    %v95 = vunpack.c.l.b16 %v63
    %v96 = vunpack.c.l.b16 %v64
    %v97 = vpack.c.b16 %v96, %v95
    %v115 = vunpack.c.l.b16 %v65
    %v116 = vunpack.c.h.b16 %v65
    %v117 = vunpack.c.l.b16 %v66
    %v118 = vunpack.c.h.b16 %v66
    %v119 = vunpack.c.l.b16 %v67
    %v120 = vunpack.c.h.b16 %v67
    %v121 = vunpack.c.l.b16 %v68
    %v122 = vunpack.c.h.b16 %v68
    %v123 = vunpack.c.l.b16 %v69
    %v124 = vunpack.c.h.b16 %v69
    %v125 = vunpack.c.l.b16 %v70
    %v126 = vunpack.c.h.b16 %v70
    %v127 = vunpack.c.l.b16 %v71
    %v128 = vunpack.c.h.b16 %v71
    %v129 = vunpack.c.l.b16 %v72
    %v130 = vunpack.c.h.b16 %v72
    %v131 = vunpack.c.l.b16 %v73
    %v132 = vunpack.c.h.b16 %v73
    %v133 = vunpack.c.l.b16 %v74
    %v134 = vunpack.c.h.b16 %v74
    %v135 = vunpack.c.l.b16 %v75
    %v136 = vunpack.c.h.b16 %v75
    %v137 = vunpack.c.l.b16 %v76
    %v138 = vunpack.c.h.b16 %v76
    %v139 = vunpack.c.l.b16 %v77
    %v140 = vunpack.c.h.b16 %v77
    %v141 = vunpack.c.l.b16 %v78
    %v142 = vunpack.c.h.b16 %v78
    %v143 = vunpack.c.l.b16 %v79
    %v144 = vunpack.c.h.b16 %v79
    %v145 = vunpack.c.l.b16 %v80
    %v146 = vunpack.c.h.b16 %v80
    %v147 = vpack.c.b16 %v117, %v115
    %v148 = vpack.c.b16 %v118, %v116
    %v149 = vpack.c.b16 %v121, %v119
    %v150 = vpack.c.b16 %v122, %v120
    %v151 = vpack.c.b16 %v125, %v123
    %v152 = vpack.c.b16 %v126, %v124
    %v153 = vpack.c.b16 %v129, %v127
    %v154 = vpack.c.b16 %v130, %v128
    %v155 = vpack.c.b16 %v133, %v131
    %v156 = vpack.c.b16 %v134, %v132
    %v157 = vpack.c.b16 %v137, %v135
    %v158 = vpack.c.b16 %v138, %v136
    %v159 = vpack.c.b16 %v141, %v139
    %v160 = vpack.c.b16 %v142, %v140
    %v161 = vpack.c.b16 %v145, %v143
    %v162 = vpack.c.b16 %v146, %v144
    %179 = vmatprep.subr.bf16.mxu0 %v148
    %180 = vmatpush1.bf16.msra.mxu0 %v147
    %181 = vmatprep.subr.bf16.mxu0 %v150
    %182 = vmatpush1.bf16.msra.mxu0 %v149
    %183 = vmatprep.subr.bf16.mxu0 %v152
    %184 = vmatpush1.bf16.msra.mxu0 %v151
    %185 = vmatprep.subr.bf16.mxu0 %v154
    %186 = vmatpush1.bf16.msra.mxu0 %v153
    %187 = vmatprep.subr.bf16.mxu0 %v156
    %188 = vmatpush1.bf16.msra.mxu0 %v155
    %189 = vmatprep.subr.bf16.mxu0 %v158
    %190 = vmatpush1.bf16.msra.mxu0 %v157
    %191 = vmatprep.subr.bf16.mxu0 %v160
    %192 = vmatpush1.bf16.msra.mxu0 %v159
    %193 = vmatprep.subr.bf16.mxu0 %v162
    %194 = vmatpush1.bf16.msra.mxu0 %v161
    %195 = vmatprep.subr.bf16.mxu0 0
    %196 = vmatpush1.bf16.msra.mxu0 0
    %197 = vmatprep.subr.bf16.mxu0 0
    %198 = vmatpush1.bf16.msra.mxu0 0
    %199 = vmatprep.subr.bf16.mxu0 0
    %200 = vmatpush1.bf16.msra.mxu0 0
    %201 = vmatprep.subr.bf16.mxu0 0
    %202 = vmatpush1.bf16.msra.mxu0 0
    %203 = vmatprep.subr.bf16.mxu0 0
    %204 = vmatpush1.bf16.msra.mxu0 0
    %205 = vmatprep.subr.bf16.mxu0 0
    %206 = vmatpush1.bf16.msra.mxu0 0
    %207 = vmatprep.subr.bf16.mxu0 0
    %208 = vmatpush1.bf16.msra.mxu0 0
    %209 = vmatprep.subr.bf16.mxu0 0
    %210 = vmatpush1.bf16.msra.mxu0 0
    %211 = vmatprep.mubr.bf16.mxu0 0
    %212 = vmatmul.mubr.bf16.gmra.mrb[0].mxu0 %v97
    %v213 = vpop.f32.mrb[0].mxu0
    %v214 = vadd.f32 %v86, %v213
    %v215 = vpop.f32.mrb[0].mxu0
    %v216 = vadd.f32 %v90, %v215
    %v217 = vpop.f32.mrb[0].mxu0
    %v218 = vadd.f32 %v86, %v217
    %v219 = vpop.f32.mrb[0].mxu0
    %v220 = vadd.f32 %v90, %v219
    %221 = vdwg.mxu0
    %v222 = vmul.f32 %v214, 0.5
    %v223 = vmul.f32 %v216, 0.5
    %v224 = vmul.f32 %v218, 0.5
    %v225 = vmul.f32 %v220, 0.5
    %v226 = vmul.f32 %v214, 0.70710677
    %v227 = vmul.f32 %v216, 0.70710677
    %v228 = vmul.f32 %v218, 0.70710677
    %v229 = vmul.f32 %v220, 0.70710677
    %v230 = verf.f32.pop %v226
    %v231 = verf.f32.pop %v227
    %v232 = verf.f32.pop %v228
    %v233 = verf.f32.pop %v229
    %v234 = vadd.f32 %v230, 1.0
    %v235 = vadd.f32 %v231, 1.0
    %v236 = vadd.f32 %v232, 1.0
    %v237 = vadd.f32 %v233, 1.0
    %v238 = vmul.f32 %v222, %v234
    %v239 = vmul.f32 %v223, %v235
    %v240 = vmul.f32 %v224, %v236
    %v241 = vmul.f32 %v225, %v237
    %v242 = vpack.c.bf16 %v240, %v238
    %v243 = vpack.c.bf16 %v241, %v239
    %v244 = vld [vmem:[#allocation7] sm:$0xf]
    %v245 = vld [vmem:[#allocation7 + $0x4] sm:$0xf]
    %v246 = vld [vmem:[#allocation7 + $0x8] sm:$0xf]
    %v247 = vld [vmem:[#allocation7 + $0xc] sm:$0xf]
    %v248 = vld [vmem:[#allocation7 + $0x10] sm:$0xf]
    %v249 = vld [vmem:[#allocation7 + $0x14] sm:$0xf]
    %v250 = vld [vmem:[#allocation7 + $0x18] sm:$0xf]
    %v251 = vld [vmem:[#allocation7 + $0x1c] sm:$0xf]
    %v252 = vld [vmem:[#allocation7 + $0x20] sm:$0xf]
    %v253 = vld [vmem:[#allocation7 + $0x24] sm:$0xf]
    %v254 = vld [vmem:[#allocation7 + $0x28] sm:$0xf]
    %v255 = vld [vmem:[#allocation7 + $0x2c] sm:$0xf]
    %v256 = vld [vmem:[#allocation7 + $0x30] sm:$0xf]
    %v257 = vld [vmem:[#allocation7 + $0x34] sm:$0xf]
    %v258 = vld [vmem:[#allocation7 + $0x38] sm:$0xf]
    %v259 = vld [vmem:[#allocation7 + $0x3c] sm:$0xf]
    %v260 = vld [vmem:[#allocation7 + $0x40] sm:$0xf]
    %v261 = vld [vmem:[#allocation7 + $0x44] sm:$0xf]
    %v262 = vld [vmem:[#allocation7 + $0x48] sm:$0xf]
    %v263 = vld [vmem:[#allocation7 + $0x4c] sm:$0xf]
    %v264 = vld [vmem:[#allocation7 + $0x50] sm:$0xf]
    %v265 = vld [vmem:[#allocation7 + $0x54] sm:$0xf]
    %v266 = vld [vmem:[#allocation7 + $0x58] sm:$0xf]
    %v267 = vld [vmem:[#allocation7 + $0x5c] sm:$0xf]
    %v268 = vld [vmem:[#allocation7 + $0x60] sm:$0xf]
    %v269 = vld [vmem:[#allocation7 + $0x64] sm:$0xf]
    %v270 = vld [vmem:[#allocation7 + $0x68] sm:$0xf]
    %v271 = vld [vmem:[#allocation7 + $0x6c] sm:$0xf]
    %v272 = vld [vmem:[#allocation7 + $0x70] sm:$0xf]
    %v273 = vld [vmem:[#allocation7 + $0x74] sm:$0xf]
    %v274 = vld [vmem:[#allocation7 + $0x78] sm:$0xf]
    %v275 = vld [vmem:[#allocation7 + $0x7c] sm:$0xf]
    %v276 = vld [vmem:[%s4] sm:$0x1]
    %v278 = vlaneseq
    %v279 = vshrl.u32 %v278, 7
    %v280 = vsub.s32 0, %v279
    %v281 = vrot.slane %v276, %v280
    %v315 = vunpack.c.l.b16 %v244
    %v316 = vunpack.c.l.b16 %v245
    %v317 = vunpack.c.l.b16 %v246
    %v318 = vunpack.c.l.b16 %v247
    %v319 = vunpack.c.l.b16 %v248
    %v320 = vunpack.c.l.b16 %v249
    %v321 = vunpack.c.l.b16 %v250
    %v322 = vunpack.c.l.b16 %v251
    %v323 = vunpack.c.l.b16 %v252
    %v324 = vunpack.c.l.b16 %v253
    %v325 = vunpack.c.l.b16 %v254
    %v326 = vunpack.c.l.b16 %v255
    %v327 = vunpack.c.l.b16 %v256
    %v328 = vunpack.c.l.b16 %v257
    %v329 = vunpack.c.l.b16 %v258
    %v330 = vunpack.c.l.b16 %v259
    %v331 = vunpack.c.l.b16 %v260
    %v332 = vunpack.c.l.b16 %v261
    %v333 = vunpack.c.l.b16 %v262
    %v334 = vunpack.c.l.b16 %v263
    %v335 = vunpack.c.l.b16 %v264
    %v336 = vunpack.c.l.b16 %v265
    %v337 = vunpack.c.l.b16 %v266
    %v338 = vunpack.c.l.b16 %v267
    %v339 = vunpack.c.l.b16 %v268
    %v340 = vunpack.c.l.b16 %v269
    %v341 = vunpack.c.l.b16 %v270
    %v342 = vunpack.c.l.b16 %v271
    %v343 = vunpack.c.l.b16 %v272
    %v344 = vunpack.c.l.b16 %v273
    %v345 = vunpack.c.l.b16 %v274
    %v346 = vunpack.c.l.b16 %v275
    %v347 = vpack.c.b16 %v316, %v315
    %v348 = vpack.c.b16 %v318, %v317
    %v349 = vpack.c.b16 %v320, %v319
    %v350 = vpack.c.b16 %v322, %v321
    %v351 = vpack.c.b16 %v324, %v323
    %v352 = vpack.c.b16 %v326, %v325
    %v353 = vpack.c.b16 %v328, %v327
    %v354 = vpack.c.b16 %v330, %v329
    %v355 = vpack.c.b16 %v332, %v331
    %v356 = vpack.c.b16 %v334, %v333
    %v357 = vpack.c.b16 %v336, %v335
    %v358 = vpack.c.b16 %v338, %v337
    %v359 = vpack.c.b16 %v340, %v339
    %v360 = vpack.c.b16 %v342, %v341
    %v361 = vpack.c.b16 %v344, %v343
    %v362 = vpack.c.b16 %v346, %v345
    %379 = vmatprep.subr.bf16.mxu0 0
    %380 = vmatpush1.bf16.msra.mxu0 %v347
    %381 = vmatprep.subr.bf16.mxu0 0
    %382 = vmatpush1.bf16.msra.mxu0 %v348
    %383 = vmatprep.subr.bf16.mxu0 0
    %384 = vmatpush1.bf16.msra.mxu0 %v349
    %385 = vmatprep.subr.bf16.mxu0 0
    %386 = vmatpush1.bf16.msra.mxu0 %v350
    %387 = vmatprep.subr.bf16.mxu0 0
    %388 = vmatpush1.bf16.msra.mxu0 %v351
    %389 = vmatprep.subr.bf16.mxu0 0
    %390 = vmatpush1.bf16.msra.mxu0 %v352
    %391 = vmatprep.subr.bf16.mxu0 0
    %392 = vmatpush1.bf16.msra.mxu0 %v353
    %393 = vmatprep.subr.bf16.mxu0 0
    %394 = vmatpush1.bf16.msra.mxu0 %v354
    %395 = vmatprep.subr.bf16.mxu0 0
    %396 = vmatpush1.bf16.msra.mxu0 %v355
    %397 = vmatprep.subr.bf16.mxu0 0
    %398 = vmatpush1.bf16.msra.mxu0 %v356
    %399 = vmatprep.subr.bf16.mxu0 0
    %400 = vmatpush1.bf16.msra.mxu0 %v357
    %401 = vmatprep.subr.bf16.mxu0 0
    %402 = vmatpush1.bf16.msra.mxu0 %v358
    %403 = vmatprep.subr.bf16.mxu0 0
    %404 = vmatpush1.bf16.msra.mxu0 %v359
    %405 = vmatprep.subr.bf16.mxu0 0
    %406 = vmatpush1.bf16.msra.mxu0 %v360
    %407 = vmatprep.subr.bf16.mxu0 0
    %408 = vmatpush1.bf16.msra.mxu0 %v361
    %409 = vmatprep.subr.bf16.mxu0 0
    %410 = vmatpush1.bf16.msra.mxu0 %v362
    %411 = vmatprep.mubr.bf16.mxu0 %v243
    %412 = vmatmul.mubr.bf16.gmra.mrb[0].mxu0 %v242
    %v413 = vpop.f32.mrb[0].mxu0
    %v414 = vadd.f32 %v281, %v413
    %v415 = vpop.f32.mrb[0].mxu0
    %v416 = vpop.f32.mrb[0].mxu0
    %v417 = vadd.f32 %v281, %v416
    %v418 = vpop.f32.mrb[0].mxu0
    %419 = vdwg.mxu0
    %420 = vst [vmem:[#allocation8] sm:$0xff] %v414
    %421 = vst [vmem:[#allocation8 + $0x8] sm:$0xff] %v417
    // Predicated region
    $region34: #{tpu_custom_call.1} parent=1 // pred_check
      _
    $region35: #{tpu_custom_call.1} parent=1 // pred_check_branch
      %423 = sbr.rel (0) target = $region37
    $region36: #{tpu_custom_call.1} parent=1 // pred_region
      %s425 = ssub.s32 256, 256
      %426 = vsyncadd [#allocation4], %s425
      %s427 = sshll.u32 [#allocation8], 4
      %s428 = int_to_ptr.vmem [resolvable:$true] %s427
      %433 = dma.vmem_to_hbm [thread:$0]  %s428, 256, %s5, [#allocation4], 128, 128, 8
    $region37: #{tpu_custom_call.1} parent=1 // pred_fallthru
      _
    // Predicated region
    $region38: #{tpu_custom_call.1} parent=1 // pred_check
      _
    $region39: #{tpu_custom_call.1} parent=1 // pred_check_branch
      %435 = sbr.rel (0) target = $region41
    $region40: #{tpu_custom_call.1} parent=1 // pred_region
      %436 = dma.done [#allocation4], 256
    $region41: #{tpu_custom_call.1} parent=1 // pred_fallthru
      _
    %437 = vsyncpa [#allocation3], 1
    %438 = vsyncpa [#allocation6], 1
    %439 = vsyncpa [#allocation4], 1

// kernel: tpu_custom_call.1
$region0: #{tpu_custom_call.1}
  #allocation0 [shape = 'u32[]', space=smem, size = 0x4, offset = 0x4, fixed_abs, tag = 'smem constant byte address 0x4 - core index']
  #allocation1 [shape = 'u32[144,128]{1,0:T(1,128)}', space=vmem, size = 0x12000, scoped, tag = 'internal scratch']
  %s0 = inlined_call_operand.hbm [shape: bf16[16,128], index: 0, kind: input, shape index: {}]
  %s1 = inlined_call_operand.hbm [shape: bf16[128,256], index: 1, kind: input, shape index: {}]
  %s2 = inlined_call_operand.vmem [shape: f32[1,256], index: 2, kind: input, shape index: {}]
  %s3 = inlined_call_operand.hbm [shape: bf16[256,128], index: 3, kind: input, shape index: {}]
  %s4 = inlined_call_operand.vmem [shape: f32[1,128], index: 4, kind: input, shape index: {}]
  %s5 = inlined_call_operand.hbm [shape: f32[16,128], index: 5, kind: output, shape index: {}]
  %s6 = sld [smem:[#allocation0]]
  $region42: #{tpu_custom_call.1} parent=0
    _
  %s8 = ssub.s32 1, %s6
  %s9 = scalar_select 0, %s8, %s6
  $region1: #{tpu_custom_call.1} parent=0
    #allocation2 [shape = 'u8[4096]{0}', space=vmem, size = 0x1000, scoped, tag = 'input window, operand 0, single buffered']
    #allocation3 [shape = 's32[1]{0}', space=sflag, size = 0x4, scoped, tag = 'scoped memory for tpu_custom_call.1']
    #allocation4 [shape = 's32[1]{0}', space=sflag, size = 0x4, scoped, tag = 'scoped memory for tpu_custom_call.1']
    #allocation5 [shape = 'u8[65536]{0}', space=vmem, size = 0x10000, scoped, tag = 'input window, operand 1, single buffered']
    #allocation6 [shape = 's32[1]{0}', space=sflag, size = 0x4, scoped, tag = 'scoped memory for tpu_custom_call.1']
    #allocation7 [shape = 'u8[65536]{0}', space=vmem, size = 0x10000, scoped, tag = 'input window, operand 3, single buffered']
    #allocation8 [shape = 'u8[8192]{0}', space=vmem, size = 0x2000, scoped, tag = 'output window, operand 0, single buffered']
    %10 = vsyncpa [#allocation3], 0
    %11 = vsyncpa [#allocation6], 0
    %12 = vsyncpa [#allocation4], 0
    // Predicated region
    $region2: #{tpu_custom_call.1} parent=1 // pred_check
      _
    $region3: #{tpu_custom_call.1} parent=1 // pred_check_branch
      %14 = sbr.rel (0) target = $region5
    $region4: #{tpu_custom_call.1} parent=1 // pred_region
      %s16 = ssub.s32 128, 128
      %17 = vsyncadd [#allocation3], %s16
      %s18 = sshll.u32 [#allocation2], 4
      %s19 = int_to_ptr.vmem [resolvable:$true] %s18
      %24 = dma.hbm_to_vmem [thread:$0]  %s0, 128, %s19, [#allocation3], 64, 64, 4
    $region5: #{tpu_custom_call.1} parent=1 // pred_fallthru
      _
    // Predicated region
    $region6: #{tpu_custom_call.1} parent=1 // pred_check
      _
    $region7: #{tpu_custom_call.1} parent=1 // pred_check_branch
      %26 = sbr.rel (0) target = $region9
    $region8: #{tpu_custom_call.1} parent=1 // pred_region
      %s28 = ssub.s32 2048, 2048
      %29 = vsyncadd [#allocation6], %s28
      %s30 = sshll.u32 [#allocation5], 4
      %s31 = int_to_ptr.vmem [resolvable:$true] %s30
      %36 = dma.hbm_to_vmem [thread:$0]  %s1, 2048, %s31, [#allocation6], 128, 128, 8
    $region9: #{tpu_custom_call.1} parent=1 // pred_fallthru
      _
    // Predicated region
    $region10: #{tpu_custom_call.1} parent=1 // pred_check
      _
    $region11: #{tpu_custom_call.1} parent=1 // pred_check_branch
      %38 = sbr.rel (0) target = $region13
    $region12: #{tpu_custom_call.1} parent=1 // pred_region
      _
    $region13: #{tpu_custom_call.1} parent=1 // pred_fallthru
      _
    // Predicated region
    $region14: #{tpu_custom_call.1} parent=1 // pred_check
      _
    $region15: #{tpu_custom_call.1} parent=1 // pred_check_branch
      %40 = sbr.rel (0) target = $region17
    $region16: #{tpu_custom_call.1} parent=1 // pred_region
      %s42 = ssub.s32 2048, 2048
      %43 = vsyncadd [#allocation6], %s42
      %s44 = sshll.u32 [#allocation7], 4
      %s45 = int_to_ptr.vmem [resolvable:$true] %s44
      %50 = dma.hbm_to_vmem [thread:$0]  %s3, 2048, %s45, [#allocation6], 64, 64, 4
    $region17: #{tpu_custom_call.1} parent=1 // pred_fallthru
      _
    // Predicated region
    $region18: #{tpu_custom_call.1} parent=1 // pred_check
      _
    $region19: #{tpu_custom_call.1} parent=1 // pred_check_branch
      %52 = sbr.rel (0) target = $region21
    $region20: #{tpu_custom_call.1} parent=1 // pred_region
      _
    $region21: #{tpu_custom_call.1} parent=1 // pred_fallthru
      _
    // Predicated region
    $region22: #{tpu_custom_call.1} parent=1 // pred_check
      _
    $region23: #{tpu_custom_call.1} parent=1 // pred_check_branch
      %54 = sbr.rel (0) target = $region25
    $region24: #{tpu_custom_call.1} parent=1 // pred_region
      %55 = dma.done [#allocation3], 128
    $region25: #{tpu_custom_call.1} parent=1 // pred_fallthru
      _
    // Predicated region
    $region26: #{tpu_custom_call.1} parent=1 // pred_check
      _
    $region27: #{tpu_custom_call.1} parent=1 // pred_check_branch
      %57 = sbr.rel (0) target = $region29
    $region28: #{tpu_custom_call.1} parent=1 // pred_region
      %58 = dma.done [#allocation6], 2048
    $region29: #{tpu_custom_call.1} parent=1 // pred_fallthru
      _
    // Predicated region
    $region30: #{tpu_custom_call.1} parent=1 // pred_check
      _
    $region31: #{tpu_custom_call.1} parent=1 // pred_check_branch
      %60 = sbr.rel (0) target = $region33
    $region32: #{tpu_custom_call.1} parent=1 // pred_region
      %61 = dma.done [#allocation6], 2048
    $region33: #{tpu_custom_call.1} parent=1 // pred_fallthru
      _
    %v63 = vld [vmem:[#allocation2] sm:$0xf]
    %v64 = vld [vmem:[#allocation2 + $0x4] sm:$0xf]
    %v65 = vld [vmem:[#allocation5] sm:$0xff]
    %v66 = vld [vmem:[#allocation5 + $0x8] sm:$0xff]
    %v67 = vld [vmem:[#allocation5 + $0x10] sm:$0xff]
    %v68 = vld [vmem:[#allocation5 + $0x18] sm:$0xff]
    %v69 = vld [vmem:[#allocation5 + $0x20] sm:$0xff]
    %v70 = vld [vmem:[#allocation5 + $0x28] sm:$0xff]
    %v71 = vld [vmem:[#allocation5 + $0x30] sm:$0xff]
    %v72 = vld [vmem:[#allocation5 + $0x38] sm:$0xff]
    %v73 = vld [vmem:[#allocation5 + $0x40] sm:$0xff]
    %v74 = vld [vmem:[#allocation5 + $0x48] sm:$0xff]
    %v75 = vld [vmem:[#allocation5 + $0x50] sm:$0xff]
    %v76 = vld [vmem:[#allocation5 + $0x58] sm:$0xff]
    %v77 = vld [vmem:[#allocation5 + $0x60] sm:$0xff]
    %v78 = vld [vmem:[#allocation5 + $0x68] sm:$0xff]
    %v79 = vld [vmem:[#allocation5 + $0x70] sm:$0xff]
    %v80 = vld [vmem:[#allocation5 + $0x78] sm:$0xff]
    %v81 = vld [vmem:[%s2] sm:$0x3]
    %v83 = vlaneseq
    %v84 = vshrl.u32 %v83, 7
    %v85 = vsub.s32 0, %v84
    %v86 = vrot.slane %v81, %v85
    %v87 = vlaneseq
    %v88 = vshrl.u32 %v87, 7
    %v89 = vsub.s32 1, %v88
    %v90 = vrot.slane %v81, %v89
    %v95 = vunpack.c.l.b16 %v63
    %v96 = vunpack.c.l.b16 %v64
    %v97 = vpack.c.b16 %v96, %v95
    %v115 = vunpack.c.l.b16 %v65
    %v116 = vunpack.c.h.b16 %v65
    %v117 = vunpack.c.l.b16 %v66
    %v118 = vunpack.c.h.b16 %v66
    %v119 = vunpack.c.l.b16 %v67
    %v120 = vunpack.c.h.b16 %v67
    %v121 = vunpack.c.l.b16 %v68
    %v122 = vunpack.c.h.b16 %v68
    %v123 = vunpack.c.l.b16 %v69
    %v124 = vunpack.c.h.b16 %v69
    %v125 = vunpack.c.l.b16 %v70
    %v126 = vunpack.c.h.b16 %v70
    %v127 = vunpack.c.l.b16 %v71
    %v128 = vunpack.c.h.b16 %v71
    %v129 = vunpack.c.l.b16 %v72
    %v130 = vunpack.c.h.b16 %v72
    %v131 = vunpack.c.l.b16 %v73
    %v132 = vunpack.c.h.b16 %v73
    %v133 = vunpack.c.l.b16 %v74
    %v134 = vunpack.c.h.b16 %v74
    %v135 = vunpack.c.l.b16 %v75
    %v136 = vunpack.c.h.b16 %v75
    %v137 = vunpack.c.l.b16 %v76
    %v138 = vunpack.c.h.b16 %v76
    %v139 = vunpack.c.l.b16 %v77
    %v140 = vunpack.c.h.b16 %v77
    %v141 = vunpack.c.l.b16 %v78
    %v142 = vunpack.c.h.b16 %v78
    %v143 = vunpack.c.l.b16 %v79
    %v144 = vunpack.c.h.b16 %v79
    %v145 = vunpack.c.l.b16 %v80
    %v146 = vunpack.c.h.b16 %v80
    %v147 = vpack.c.b16 %v117, %v115
    %v148 = vpack.c.b16 %v118, %v116
    %v149 = vpack.c.b16 %v121, %v119
    %v150 = vpack.c.b16 %v122, %v120
    %v151 = vpack.c.b16 %v125, %v123
    %v152 = vpack.c.b16 %v126, %v124
    %v153 = vpack.c.b16 %v129, %v127
    %v154 = vpack.c.b16 %v130, %v128
    %v155 = vpack.c.b16 %v133, %v131
    %v156 = vpack.c.b16 %v134, %v132
    %v157 = vpack.c.b16 %v137, %v135
    %v158 = vpack.c.b16 %v138, %v136
    %v159 = vpack.c.b16 %v141, %v139
    %v160 = vpack.c.b16 %v142, %v140
    %v161 = vpack.c.b16 %v145, %v143
    %v162 = vpack.c.b16 %v146, %v144
    %179 = vmatprep.subr.bf16.mxu0 %v148
    %180 = vmatpush1.bf16.msra.mxu0 %v147
    %181 = vmatprep.subr.bf16.mxu0 %v150
    %182 = vmatpush1.bf16.msra.mxu0 %v149
    %183 = vmatprep.subr.bf16.mxu0 %v152
    %184 = vmatpush1.bf16.msra.mxu0 %v151
    %185 = vmatprep.subr.bf16.mxu0 %v154
    %186 = vmatpush1.bf16.msra.mxu0 %v153
    %187 = vmatprep.subr.bf16.mxu0 %v156
    %188 = vmatpush1.bf16.msra.mxu0 %v155
    %189 = vmatprep.subr.bf16.mxu0 %v158
    %190 = vmatpush1.bf16.msra.mxu0 %v157
    %191 = vmatprep.subr.bf16.mxu0 %v160
    %192 = vmatpush1.bf16.msra.mxu0 %v159
    %193 = vmatprep.subr.bf16.mxu0 %v162
    %194 = vmatpush1.bf16.msra.mxu0 %v161
    %195 = vmatprep.subr.bf16.mxu0 0
    %196 = vmatpush1.bf16.msra.mxu0 0
    %197 = vmatprep.subr.bf16.mxu0 0
    %198 = vmatpush1.bf16.msra.mxu0 0
    %199 = vmatprep.subr.bf16.mxu0 0
    %200 = vmatpush1.bf16.msra.mxu0 0
    %201 = vmatprep.subr.bf16.mxu0 0
    %202 = vmatpush1.bf16.msra.mxu0 0
    %203 = vmatprep.subr.bf16.mxu0 0
    %204 = vmatpush1.bf16.msra.mxu0 0
    %205 = vmatprep.subr.bf16.mxu0 0
    %206 = vmatpush1.bf16.msra.mxu0 0
    %207 = vmatprep.subr.bf16.mxu0 0
    %208 = vmatpush1.bf16.msra.mxu0 0
    %209 = vmatprep.subr.bf16.mxu0 0
    %210 = vmatpush1.bf16.msra.mxu0 0
    %211 = vmatprep.mubr.bf16.mxu0 0
    %212 = vmatmul.mubr.bf16.gmra.mrb[0].mxu0 %v97
    %v213 = vpop.f32.mrb[0].mxu0
    %v214 = vadd.f32 %v86, %v213
    %v215 = vpop.f32.mrb[0].mxu0
    %v216 = vadd.f32 %v90, %v215
    %v217 = vpop.f32.mrb[0].mxu0
    %v218 = vadd.f32 %v86, %v217
    %v219 = vpop.f32.mrb[0].mxu0
    %v220 = vadd.f32 %v90, %v219
    %221 = vdwg.mxu0
    %v222 = vmul.f32 %v214, 0.5
    %v223 = vmul.f32 %v216, 0.5
    %v224 = vmul.f32 %v218, 0.5
    %v225 = vmul.f32 %v220, 0.5
    %v226 = vmul.f32 %v214, 0.70710677
    %v227 = vmul.f32 %v216, 0.70710677
    %v228 = vmul.f32 %v218, 0.70710677
    %v229 = vmul.f32 %v220, 0.70710677
    %v230 = verf.f32.pop %v226
    %v231 = verf.f32.pop %v227
    %v232 = verf.f32.pop %v228
    %v233 = verf.f32.pop %v229
    %v234 = vadd.f32 %v230, 1.0
    %v235 = vadd.f32 %v231, 1.0
    %v236 = vadd.f32 %v232, 1.0
    %v237 = vadd.f32 %v233, 1.0
    %v238 = vmul.f32 %v222, %v234
    %v239 = vmul.f32 %v223, %v235
    %v240 = vmul.f32 %v224, %v236
    %v241 = vmul.f32 %v225, %v237
    %v242 = vpack.c.bf16 %v240, %v238
    %v243 = vpack.c.bf16 %v241, %v239
    %v244 = vld [vmem:[#allocation7] sm:$0xf]
    %v245 = vld [vmem:[#allocation7 + $0x4] sm:$0xf]
    %v246 = vld [vmem:[#allocation7 + $0x8] sm:$0xf]
    %v247 = vld [vmem:[#allocation7 + $0xc] sm:$0xf]
    %v248 = vld [vmem:[#allocation7 + $0x10] sm:$0xf]
    %v249 = vld [vmem:[#allocation7 + $0x14] sm:$0xf]
    %v250 = vld [vmem:[#allocation7 + $0x18] sm:$0xf]
    %v251 = vld [vmem:[#allocation7 + $0x1c] sm:$0xf]
    %v252 = vld [vmem:[#allocation7 + $0x20] sm:$0xf]
    %v253 = vld [vmem:[#allocation7 + $0x24] sm:$0xf]
    %v254 = vld [vmem:[#allocation7 + $0x28] sm:$0xf]
    %v255 = vld [vmem:[#allocation7 + $0x2c] sm:$0xf]
    %v256 = vld [vmem:[#allocation7 + $0x30] sm:$0xf]
    %v257 = vld [vmem:[#allocation7 + $0x34] sm:$0xf]
    %v258 = vld [vmem:[#allocation7 + $0x38] sm:$0xf]
    %v259 = vld [vmem:[#allocation7 + $0x3c] sm:$0xf]
    %v260 = vld [vmem:[#allocation7 + $0x40] sm:$0xf]
    %v261 = vld [vmem:[#allocation7 + $0x44] sm:$0xf]
    %v262 = vld [vmem:[#allocation7 + $0x48] sm:$0xf]
    %v263 = vld [vmem:[#allocation7 + $0x4c] sm:$0xf]
    %v264 = vld [vmem:[#allocation7 + $0x50] sm:$0xf]
    %v265 = vld [vmem:[#allocation7 + $0x54] sm:$0xf]
    %v266 = vld [vmem:[#allocation7 + $0x58] sm:$0xf]
    %v267 = vld [vmem:[#allocation7 + $0x5c] sm:$0xf]
    %v268 = vld [vmem:[#allocation7 + $0x60] sm:$0xf]
    %v269 = vld [vmem:[#allocation7 + $0x64] sm:$0xf]
    %v270 = vld [vmem:[#allocation7 + $0x68] sm:$0xf]
    %v271 = vld [vmem:[#allocation7 + $0x6c] sm:$0xf]
    %v272 = vld [vmem:[#allocation7 + $0x70] sm:$0xf]
    %v273 = vld [vmem:[#allocation7 + $0x74] sm:$0xf]
    %v274 = vld [vmem:[#allocation7 + $0x78] sm:$0xf]
    %v275 = vld [vmem:[#allocation7 + $0x7c] sm:$0xf]
    %v276 = vld [vmem:[%s4] sm:$0x1]
    %v278 = vlaneseq
    %v279 = vshrl.u32 %v278, 7
    %v280 = vsub.s32 0, %v279
    %v281 = vrot.slane %v276, %v280
    %v315 = vunpack.c.l.b16 %v244
    %v316 = vunpack.c.l.b16 %v245
    %v317 = vunpack.c.l.b16 %v246
    %v318 = vunpack.c.l.b16 %v247
    %v319 = vunpack.c.l.b16 %v248
    %v320 = vunpack.c.l.b16 %v249
    %v321 = vunpack.c.l.b16 %v250
    %v322 = vunpack.c.l.b16 %v251
    %v323 = vunpack.c.l.b16 %v252
    %v324 = vunpack.c.l.b16 %v253
    %v325 = vunpack.c.l.b16 %v254
    %v326 = vunpack.c.l.b16 %v255
    %v327 = vunpack.c.l.b16 %v256
    %v328 = vunpack.c.l.b16 %v257
    %v329 = vunpack.c.l.b16 %v258
    %v330 = vunpack.c.l.b16 %v259
    %v331 = vunpack.c.l.b16 %v260
    %v332 = vunpack.c.l.b16 %v261
    %v333 = vunpack.c.l.b16 %v262
    %v334 = vunpack.c.l.b16 %v263
    %v335 = vunpack.c.l.b16 %v264
    %v336 = vunpack.c.l.b16 %v265
    %v337 = vunpack.c.l.b16 %v266
    %v338 = vunpack.c.l.b16 %v267
    %v339 = vunpack.c.l.b16 %v268
    %v340 = vunpack.c.l.b16 %v269
    %v341 = vunpack.c.l.b16 %v270
    %v342 = vunpack.c.l.b16 %v271
    %v343 = vunpack.c.l.b16 %v272
    %v344 = vunpack.c.l.b16 %v273
    %v345 = vunpack.c.l.b16 %v274
    %v346 = vunpack.c.l.b16 %v275
    %v347 = vpack.c.b16 %v316, %v315
    %v348 = vpack.c.b16 %v318, %v317
    %v349 = vpack.c.b16 %v320, %v319
    %v350 = vpack.c.b16 %v322, %v321
    %v351 = vpack.c.b16 %v324, %v323
    %v352 = vpack.c.b16 %v326, %v325
    %v353 = vpack.c.b16 %v328, %v327
    %v354 = vpack.c.b16 %v330, %v329
    %v355 = vpack.c.b16 %v332, %v331
    %v356 = vpack.c.b16 %v334, %v333
    %v357 = vpack.c.b16 %v336, %v335
    %v358 = vpack.c.b16 %v338, %v337
    %v359 = vpack.c.b16 %v340, %v339
    %v360 = vpack.c.b16 %v342, %v341
    %v361 = vpack.c.b16 %v344, %v343
    %v362 = vpack.c.b16 %v346, %v345
    %379 = vmatprep.subr.bf16.mxu0 0
    %380 = vmatpush1.bf16.msra.mxu0 %v347
    %381 = vmatprep.subr.bf16.mxu0 0
    %382 = vmatpush1.bf16.msra.mxu0 %v348
    %383 = vmatprep.subr.bf16.mxu0 0
    %384 = vmatpush1.bf16.msra.mxu0 %v349
    %385 = vmatprep.subr.bf16.mxu0 0
    %386 = vmatpush1.bf16.msra.mxu0 %v350
    %387 = vmatprep.subr.bf16.mxu0 0
    %388 = vmatpush1.bf16.msra.mxu0 %v351
    %389 = vmatprep.subr.bf16.mxu0 0
    %390 = vmatpush1.bf16.msra.mxu0 %v352
    %391 = vmatprep.subr.bf16.mxu0 0
    %392 = vmatpush1.bf16.msra.mxu0 %v353
    %393 = vmatprep.subr.bf16.mxu0 0
    %394 = vmatpush1.bf16.msra.mxu0 %v354
    %395 = vmatprep.subr.bf16.mxu0 0
    %396 = vmatpush1.bf16.msra.mxu0 %v355
    %397 = vmatprep.subr.bf16.mxu0 0
    %398 = vmatpush1.bf16.msra.mxu0 %v356
    %399 = vmatprep.subr.bf16.mxu0 0
    %400 = vmatpush1.bf16.msra.mxu0 %v357
    %401 = vmatprep.subr.bf16.mxu0 0
    %402 = vmatpush1.bf16.msra.mxu0 %v358
    %403 = vmatprep.subr.bf16.mxu0 0
    %404 = vmatpush1.bf16.msra.mxu0 %v359
    %405 = vmatprep.subr.bf16.mxu0 0
    %406 = vmatpush1.bf16.msra.mxu0 %v360
    %407 = vmatprep.subr.bf16.mxu0 0
    %408 = vmatpush1.bf16.msra.mxu0 %v361
    %409 = vmatprep.subr.bf16.mxu0 0
    %410 = vmatpush1.bf16.msra.mxu0 %v362
    %411 = vmatprep.mubr.bf16.mxu0 %v243
    %412 = vmatmul.mubr.bf16.gmra.mrb[0].mxu0 %v242
    %v413 = vpop.f32.mrb[0].mxu0
    %v414 = vadd.f32 %v281, %v413
    %v415 = vpop.f32.mrb[0].mxu0
    %v416 = vpop.f32.mrb[0].mxu0
    %v417 = vadd.f32 %v281, %v416
    %v418 = vpop.f32.mrb[0].mxu0
    %419 = vdwg.mxu0
    %420 = vst [vmem:[#allocation8] sm:$0xff] %v414
    %421 = vst [vmem:[#allocation8 + $0x8] sm:$0xff] %v417
    // Predicated region
    $region34: #{tpu_custom_call.1} parent=1 // pred_check
      _
    $region35: #{tpu_custom_call.1} parent=1 // pred_check_branch
      %423 = sbr.rel (0) target = $region37
    $region36: #{tpu_custom_call.1} parent=1 // pred_region
      %s425 = ssub.s32 256, 256
      %426 = vsyncadd [#allocation4], %s425
      %s427 = sshll.u32 [#allocation8], 4
      %s428 = int_to_ptr.vmem [resolvable:$true] %s427
      %433 = dma.vmem_to_hbm [thread:$0]  %s428, 256, %s5, [#allocation4], 128, 128, 8
    $region37: #{tpu_custom_call.1} parent=1 // pred_fallthru
      _
    // Predicated region
    $region38: #{tpu_custom_call.1} parent=1 // pred_check
      _
    $region39: #{tpu_custom_call.1} parent=1 // pred_check_branch
      %435 = sbr.rel (0) target = $region41
    $region40: #{tpu_custom_call.1} parent=1 // pred_region
      %436 = dma.done [#allocation4], 256
    $region41: #{tpu_custom_call.1} parent=1 // pred_fallthru
      _
    %437 = vsyncpa [#allocation3], 1
    %438 = vsyncpa [#allocation6], 1
    %439 = vsyncpa [#allocation4], 1

</llo_original>
